<compile_context>
chip_gen: v6e
topology: v6e:2x2x1
jax: 0.10.0
libtpu: 0.0.40
codegen_flags: <defaults>
</compile_context>

<pallas_src>
import functools

import jax
import jax.numpy as jnp
from jax.experimental import pallas as pl
from jax.experimental.pallas import tpu as pltpu


def _nemotron_mlp_kernel(x_ref, wu_ref, wd_ref, o_ref, acc_ref):
    # x_ref: (tm, H)   wu_ref: (H, ti)   wd_ref: (ti, H)
    # o_ref: (tm, H)   acc_ref: (tm, H) f32 scratch, resident across ki
    ki = pl.program_id(1)

    @pl.when(ki == 0)
    def _init():
        acc_ref[...] = jnp.zeros_like(acc_ref)

    # (tm, ti) slice of the up-projection, accumulated in f32 on the MXU.
    up = jnp.dot(x_ref[...], wu_ref[...], preferred_element_type=jnp.float32)
    # relu2 activation: relu(u) ** 2, computed in f32.
    r = jnp.maximum(up, 0.0)
    act = (r * r).astype(x_ref.dtype)
    # Partial down-projection for this intermediate tile; accumulate in f32.
    acc_ref[...] += jnp.dot(act, wd_ref[...], preferred_element_type=jnp.float32)

    @pl.when(ki == pl.num_programs(1) - 1)
    def _finalize():
        o_ref[...] = acc_ref[...].astype(o_ref.dtype)


def prepare_nemotron_mlp_weights(w_up, w_down):
    """One-time (load-time) re-layout of PyTorch nn.Linear weights.

    w_up:   (I, H) -> (H, I)
    w_down: (H, I) -> (I, H)
    Do this once when loading the checkpoint, NOT per forward call.
    """
    return jnp.asarray(w_up).T, jnp.asarray(w_down).T


def _pick_ti(intermediate, requested):
    """Largest lane-aligned (multiple-of-128) divisor of I that is <= requested;
    falls back to the full I for small / oddly-sized intermediate dims."""
    if requested >= intermediate or intermediate % 128 != 0:
        return intermediate
    t = (min(requested, intermediate) // 128) * 128
    while t >= 128 and intermediate % t != 0:
        t -= 128
    return t if t >= 128 else intermediate


@functools.partial(jax.jit, static_argnames=("tm", "ti", "vmem_limit_bytes"))
def nemotron_mlp(x, w_up_t, w_down_t, *, tm=256, ti=512, vmem_limit_bytes=None):
    """Fused NemotronMLP forward.

    x:        (B, S, H)
    w_up_t:   (H, I)  — W_up.T,   from prepare_nemotron_mlp_weights
    w_down_t: (I, H)  — W_down.T, from prepare_nemotron_mlp_weights
    """
    # TODO(synk): config.mlp_bias=True (bias on both projections) not
    # implemented; Nemotron default is mlp_bias=False.
    B, S, H = x.shape
    Hw, I = w_up_t.shape
    assert Hw == H and w_down_t.shape == (I, H), "weight layout mismatch"

    M = B * S
    x2d = x.reshape(M, H)

    # Row tile: MXU-sized by default, clamped to M for small inputs and
    # zero-padded for ragged M (padded rows produce zeros and are sliced off).
    tm = min(tm, M)
    m_pad = (-M) % tm
    if m_pad:
        x2d = jnp.pad(x2d, ((0, m_pad), (0, 0)))
    Mp = M + m_pad

    # Intermediate tile: lane-aligned divisor of I (streamed reduction axis).
    ti = _pick_ti(I, ti)

    grid = (Mp // tm, I // ti)

    out2d = pl.pallas_call(
        _nemotron_mlp_kernel,
        out_shape=jax.ShapeDtypeStruct((Mp, H), x.dtype),
        grid_spec=pltpu.PrefetchScalarGridSpec(
            num_scalar_prefetch=0,
            grid=grid,
            in_specs=[
                pl.BlockSpec((tm, H), lambda i, k: (i, 0)),   # x row tile
                pl.BlockSpec((H, ti), lambda i, k: (0, k)),   # W_up.T  (H, ti)
                pl.BlockSpec((ti, H), lambda i, k: (k, 0)),   # W_down.T (ti, H)
            ],
            out_specs=pl.BlockSpec((tm, H), lambda i, k: (i, 0)),
            scratch_shapes=[pltpu.VMEM((tm, H), jnp.float32)],
        ),
        compiler_params=pltpu.CompilerParams(
            dimension_semantics=("parallel", "arbitrary"),
            vmem_limit_bytes=vmem_limit_bytes,
        ),
    )(x2d, w_up_t, w_down_t)

    if m_pad:
        out2d = out2d[:M]
    return out2d.reshape(B, S, H)


def nemotron_mlp_ref(x, w_up, w_down):
    """Pure-JAX reference in PyTorch nn.Linear layout: w_up (I,H), w_down (H,I)."""
    up = jnp.einsum("bsh,ih->bsi", x, w_up)
    act = jnp.maximum(up, 0.0) ** 2
    return jnp.einsum("bsi,hi->bsh", act, w_down)


if __name__ == "__main__":
    # --- Test 1: spec-sized toy shapes (batch=2, seq=8, hidden=32, inter=64) ---
    B, S, H, I = 2, 8, 32, 64
    kx, ku, kd = jax.random.split(jax.random.PRNGKey(0), 3)
    x = jax.random.normal(kx, (B, S, H), dtype=jnp.float32)
    w_up = jax.random.normal(ku, (I, H), dtype=jnp.float32) * (1.0 / H) ** 0.5
    w_down = jax.random.normal(kd, (H, I), dtype=jnp.float32) * (1.0 / I) ** 0.5
    w_up_t, w_down_t = prepare_nemotron_mlp_weights(w_up, w_down)

    out = nemotron_mlp(x, w_up_t, w_down_t)
    jax.block_until_ready(out)
    ref = nemotron_mlp_ref(x, w_up, w_down)
    assert out.shape == (B, S, H)
    assert jnp.allclose(out, ref, atol=1e-4, rtol=1e-4), "f32 mismatch (toy)"

    # --- Test 2: exercise the M grid + streamed I reduction (still small) ---
    B2, S2, H2, I2 = 2, 16, 128, 256
    kx2, ku2, kd2 = jax.random.split(jax.random.PRNGKey(1), 3)
    x2 = jax.random.normal(kx2, (B2, S2, H2), dtype=jnp.float32)
    w_up2 = jax.random.normal(ku2, (I2, H2), dtype=jnp.float32) * (1.0 / H2) ** 0.5
    w_down2 = jax.random.normal(kd2, (H2, I2), dtype=jnp.float32) * (1.0 / I2) ** 0.5
    wu2_t, wd2_t = prepare_nemotron_mlp_weights(w_up2, w_down2)

    out2 = nemotron_mlp(x2, wu2_t, wd2_t, tm=8, ti=128)  # grid=(4, 2)
    jax.block_until_ready(out2)
    ref2 = nemotron_mlp_ref(x2, w_up2, w_down2)
    assert jnp.allclose(out2, ref2, atol=1e-4, rtol=1e-4), "f32 mismatch (tiled)"

    # --- Test 3: bf16 operands (native MXU path), f32 in-kernel accumulation ---
    out3 = nemotron_mlp(
        x2.astype(jnp.bfloat16),
        wu2_t.astype(jnp.bfloat16),
        wd2_t.astype(jnp.bfloat16),
        tm=8, ti=128,
    )
    jax.block_until_ready(out3)
    assert jnp.allclose(out3.astype(jnp.float32), ref2, atol=1e-1, rtol=1e-1), \
        "bf16 mismatch"

    print("KERNEL_OK")
</pallas_src>

<mosaic_0001>
module attributes {stable_mosaic.version = 11 : i64} {
  func.func @_nemotron_mlp_kernel(%arg0: i32, %arg1: i32, %arg2: memref<16x32xf32, #tpu.memory_space<vmem>>, %arg3: memref<32x64xf32, #tpu.memory_space<vmem>>, %arg4: memref<64x32xf32, #tpu.memory_space<vmem>>, %arg5: memref<16x32xf32, #tpu.memory_space<vmem>>, %arg6: memref<16x32xf32, #tpu.memory_space<vmem>>) attributes {dimension_semantics = [#tpu.dimension_semantics<parallel>, #tpu.dimension_semantics<arbitrary>], iteration_bounds = array<i64: 1, 1>, scalar_prefetch = 0 : i64, scratch_operands = 1 : i64, tpu.core_type = #tpu.core_type<tc>, window_params = [{transform_indices = @transform_0, window_bounds = array<i64: 16, 32>}, {transform_indices = @transform_1, window_bounds = array<i64: 32, 64>}, {transform_indices = @transform_2, window_bounds = array<i64: 64, 32>}, {transform_indices = @transform_3, window_bounds = array<i64: 16, 32>}]} {
    %c0_i32 = arith.constant 0 : i32
    %0 = arith.cmpi eq, %arg1, %c0_i32 : i32
    %1 = arith.extui %0 : i1 to i32
    %c0_i32_0 = arith.constant 0 : i32
    %2 = arith.cmpi ne, %1, %c0_i32_0 : i32
    scf.if %2 {
      %cst_14 = arith.constant 0.000000e+00 : f32
      %17 = vector.broadcast %cst_14 : f32 to vector<16x32xf32>
      %c0_15 = arith.constant 0 : index
      %c0_16 = arith.constant 0 : index
      %18 = vector.load %arg6[%c0_15, %c0_16] : memref<16x32xf32, #tpu.memory_space<vmem>>, vector<16x32xf32>
      tpu.vector_store %arg6[%c0_15, %c0_16], %17 {strides = array<i32>} : memref<16x32xf32, #tpu.memory_space<vmem>>, vector<16x32xf32>,
    } else {
    }
    %c0 = arith.constant 0 : index
    %c0_1 = arith.constant 0 : index
    %3 = vector.load %arg2[%c0, %c0_1] : memref<16x32xf32, #tpu.memory_space<vmem>>, vector<16x32xf32>
    %c0_2 = arith.constant 0 : index
    %c0_3 = arith.constant 0 : index
    %4 = vector.load %arg3[%c0_2, %c0_3] : memref<32x64xf32, #tpu.memory_space<vmem>>, vector<32x64xf32>
    %cst = arith.constant dense<0.000000e+00> : vector<16x64xf32>
    %5 = tpu.matmul %3, %4, %cst {dimension_numbers = #tpu.dot_dimension_numbers<[1], [0], [0], [1], [0, 0, 1, 1], [], []>} : vector<16x32xf32>, vector<32x64xf32>, vector<16x64xf32> -> vector<16x64xf32>
    %cst_4 = arith.constant 0.000000e+00 : f32
    %6 = vector.broadcast %cst_4 : f32 to vector<16x64xf32>
    %7 = arith.maximumf %5, %6 : vector<16x64xf32>
    %8 = arith.mulf %7, %7 : vector<16x64xf32>
    %c0_5 = arith.constant 0 : index
    %c0_6 = arith.constant 0 : index
    %9 = vector.load %arg6[%c0_5, %c0_6] : memref<16x32xf32, #tpu.memory_space<vmem>>, vector<16x32xf32>
    %c0_7 = arith.constant 0 : index
    %c0_8 = arith.constant 0 : index
    %10 = vector.load %arg4[%c0_7, %c0_8] : memref<64x32xf32, #tpu.memory_space<vmem>>, vector<64x32xf32>
    %cst_9 = arith.constant dense<0.000000e+00> : vector<16x32xf32>
    %11 = tpu.matmul %8, %10, %cst_9 {dimension_numbers = #tpu.dot_dimension_numbers<[1], [0], [0], [1], [0, 0, 1, 1], [], []>} : vector<16x64xf32>, vector<64x32xf32>, vector<16x32xf32> -> vector<16x32xf32>
    %12 = arith.addf %9, %11 : vector<16x32xf32>
    %c0_10 = arith.constant 0 : index
    %c0_11 = arith.constant 0 : index
    %13 = vector.load %arg6[%c0_10, %c0_11] : memref<16x32xf32, #tpu.memory_space<vmem>>, vector<16x32xf32>
    tpu.vector_store %arg6[%c0_10, %c0_11], %12 {strides = array<i32>} : memref<16x32xf32, #tpu.memory_space<vmem>>, vector<16x32xf32>,
    %c0_i32_12 = arith.constant 0 : i32
    %14 = arith.cmpi eq, %arg1, %c0_i32_12 : i32
    %15 = arith.extui %14 : i1 to i32
    %c0_i32_13 = arith.constant 0 : i32
    %16 = arith.cmpi ne, %15, %c0_i32_13 : i32
    scf.if %16 {
      %c0_14 = arith.constant 0 : index
      %c0_15 = arith.constant 0 : index
      %17 = vector.load %arg6[%c0_14, %c0_15] : memref<16x32xf32, #tpu.memory_space<vmem>>, vector<16x32xf32>
      %c0_16 = arith.constant 0 : index
      %c0_17 = arith.constant 0 : index
      %18 = vector.load %arg5[%c0_16, %c0_17] : memref<16x32xf32, #tpu.memory_space<vmem>>, vector<16x32xf32>
      tpu.vector_store %arg5[%c0_16, %c0_17], %17 {strides = array<i32>} : memref<16x32xf32, #tpu.memory_space<vmem>>, vector<16x32xf32>,
    } else {
    }
    return
  }
  func.func @transform_0(%arg0: i32, %arg1: i32) -> (i32, i32) {
    %c0_i32 = arith.constant 0 : i32
    %c0_i32_0 = arith.constant 0 : i32
    return %arg0, %c0_i32 : i32, i32
  }
  func.func @transform_1(%arg0: i32, %arg1: i32) -> (i32, i32) {
    %c0_i32 = arith.constant 0 : i32
    %c0_i32_0 = arith.constant 0 : i32
    return %c0_i32, %arg1 : i32, i32
  }
  func.func @transform_2(%arg0: i32, %arg1: i32) -> (i32, i32) {
    %c0_i32 = arith.constant 0 : i32
    %c0_i32_0 = arith.constant 0 : i32
    return %arg1, %c0_i32 : i32, i32
  }
  func.func @transform_3(%arg0: i32, %arg1: i32) -> (i32, i32) {
    %c0_i32 = arith.constant 0 : i32
    %c0_i32_0 = arith.constant 0 : i32
    return %arg0, %c0_i32 : i32, i32
  }
}

</mosaic_0001>

<llo_original>
// kernel: nemotron_mlp.1
$region0: #{nemotron_mlp.1}
  #allocation0 [shape = 'u32[]', space=smem, size = 0x4, offset = 0x4, fixed_abs, tag = 'smem constant byte address 0x4 - core index']
  #allocation1 [shape = 'u32[144,128]{1,0:T(1,128)}', space=vmem, size = 0x12000, scoped, tag = 'internal scratch']
  #allocation2 [shape = 'f32[16,32]{1,0:T(8,128)}', space=vmem, size = 0x2000, scoped, tag = 'scratch operand']
  %s0 = inlined_call_operand.vmem [shape: f32[16,32], index: 0, kind: input, shape index: {}]
  %s1 = inlined_call_operand.vmem [shape: f32[32,64], index: 1, kind: input, shape index: {}]
  %s2 = inlined_call_operand.vmem [shape: f32[64,32], index: 2, kind: input, shape index: {}]
  %s3 = inlined_call_operand.hbm [shape: f32[16,32], index: 3, kind: output, shape index: {}]
  %s4 = sld [smem:[#allocation0]]
  $region30: #{nemotron_mlp.1} parent=0
    _
  %s6 = ssub.s32 1, %s4
  %s7 = scalar_select 0, %s6, %s4
  $region1: #{nemotron_mlp.1} parent=0
    #allocation3 [shape = 'u8[8192]{0}', space=vmem, size = 0x2000, scoped, tag = 'output window, operand 0, single buffered']
    #allocation4 [shape = 's32[1]{0}', space=sflag, size = 0x4, scoped, tag = 'scoped memory for nemotron_mlp.1']
    %8 = vsyncpa [#allocation4], 0
    // Predicated region
    $region2: #{nemotron_mlp.1} parent=1 // pred_check
      _
    $region3: #{nemotron_mlp.1} parent=1 // pred_check_branch
      %10 = sbr.rel (0) target = $region5
    $region4: #{nemotron_mlp.1} parent=1 // pred_region
      _
    $region5: #{nemotron_mlp.1} parent=1 // pred_fallthru
      _
    // Predicated region
    $region6: #{nemotron_mlp.1} parent=1 // pred_check
      _
    $region7: #{nemotron_mlp.1} parent=1 // pred_check_branch
      %12 = sbr.rel (0) target = $region9
    $region8: #{nemotron_mlp.1} parent=1 // pred_region
      _
    $region9: #{nemotron_mlp.1} parent=1 // pred_fallthru
      _
    // Predicated region
    $region10: #{nemotron_mlp.1} parent=1 // pred_check
      _
    $region11: #{nemotron_mlp.1} parent=1 // pred_check_branch
      %14 = sbr.rel (0) target = $region13
    $region12: #{nemotron_mlp.1} parent=1 // pred_region
      _
    $region13: #{nemotron_mlp.1} parent=1 // pred_fallthru
      _
    %p15 = scmp.eq.s32.totalorder 0, 0
    // Predicated region
    $region14: #{nemotron_mlp.1} parent=1 // pred_check
      %p16 = pneg %p15
    $region15: #{nemotron_mlp.1} parent=1 // pred_check_branch
      %18 = sbr.rel (%p16) target = $region17
    $region16: #{nemotron_mlp.1} parent=1 // pred_region
      %vm19 = vcmask 261120
      %20 = vst.msk [vmem:[#allocation2] sm:$0xff] %vm19, 0.0
      %21 = vst.msk [vmem:[#allocation2 + $0x8] sm:$0xff] %vm19, 0.0
    $region17: #{nemotron_mlp.1} parent=1 // pred_fallthru
      _
    %v22 = vld [vmem:[%s0] sm:$0xff]
    %v23 = vld [vmem:[%s0 + $0x8] sm:$0xff]
    %v24 = vld [vmem:[%s1] sm:$0xff]
    %v25 = vld [vmem:[%s1 + $0x8] sm:$0xff]
    %v26 = vld [vmem:[%s1 + $0x10] sm:$0xff]
    %v27 = vld [vmem:[%s1 + $0x18] sm:$0xff]
    %vm28 = vcmask 261120
    %v30 = vsel %vm28, %v22, 0
    %v33 = vsel %vm28, %v23, 0
    %35 = vmatprep.subr.mxu0 0.0
    %36 = vmatpush1.msra.mxu0 0.0
    %37 = vmatprep.subr.mxu0 0.0
    %38 = vmatpush1.msra.mxu0 0.0
    %39 = vmatprep.subr.mxu0 0.0
    %40 = vmatpush1.msra.mxu0 0.0
    %41 = vmatprep.subr.mxu0 0.0
    %42 = vmatpush1.msra.mxu0 0.0
    %43 = vmatprep.subr.mxu0 0.0
    %44 = vmatpush1.msra.mxu0 0.0
    %45 = vmatprep.subr.mxu0 0.0
    %46 = vmatpush1.msra.mxu0 0.0
    %47 = vmatprep.subr.mxu0 0.0
    %48 = vmatpush1.msra.mxu0 0.0
    %49 = vmatprep.subr.mxu0 0.0
    %50 = vmatpush1.msra.mxu0 0.0
    %51 = vmatprep.subr.mxu0 0.0
    %52 = vmatpush1.msra.mxu0 0.0
    %53 = vmatprep.subr.mxu0 0.0
    %54 = vmatpush1.msra.mxu0 0.0
    %55 = vmatprep.subr.mxu0 0.0
    %56 = vmatpush1.msra.mxu0 0.0
    %57 = vmatprep.subr.mxu0 0.0
    %58 = vmatpush1.msra.mxu0 0.0
    %59 = vmatprep.subr.mxu0 0.0
    %60 = vmatpush1.msra.mxu0 %v27
    %61 = vmatprep.subr.mxu0 0.0
    %62 = vmatpush1.msra.mxu0 %v26
    %63 = vmatprep.subr.mxu0 0.0
    %64 = vmatpush1.msra.mxu0 %v25
    %65 = vmatprep.subr.mxu0 0.0
    %66 = vmatpush1.msra.mxu0 %v24
    %67 = vmatprep.subr.mxu0 0.0
    %68 = vmatpush2.msra.mxu0 0.0
    %69 = vmatprep.subr.mxu0 0.0
    %70 = vmatpush2.msra.mxu0 0.0
    %71 = vmatprep.subr.mxu0 0.0
    %72 = vmatpush2.msra.mxu0 0.0
    %73 = vmatprep.subr.mxu0 0.0
    %74 = vmatpush2.msra.mxu0 0.0
    %75 = vmatprep.subr.mxu0 0.0
    %76 = vmatpush2.msra.mxu0 0.0
    %77 = vmatprep.subr.mxu0 0.0
    %78 = vmatpush2.msra.mxu0 0.0
    %79 = vmatprep.subr.mxu0 0.0
    %80 = vmatpush2.msra.mxu0 0.0
    %81 = vmatprep.subr.mxu0 0.0
    %82 = vmatpush2.msra.mxu0 0.0
    %83 = vmatprep.subr.mxu0 0.0
    %84 = vmatpush2.msra.mxu0 0.0
    %85 = vmatprep.subr.mxu0 0.0
    %86 = vmatpush2.msra.mxu0 0.0
    %87 = vmatprep.subr.mxu0 0.0
    %88 = vmatpush2.msra.mxu0 0.0
    %89 = vmatprep.subr.mxu0 0.0
    %90 = vmatpush2.msra.mxu0 0.0
    %91 = vmatprep.subr.mxu0 0.0
    %92 = vmatpush2.msra.mxu0 0.0
    %93 = vmatprep.subr.mxu0 0.0
    %94 = vmatpush2.msra.mxu0 0.0
    %95 = vmatprep.subr.mxu0 0.0
    %96 = vmatpush2.msra.mxu0 0.0
    %97 = vmatprep.subr.mxu0 0.0
    %98 = vmatpush2.msra.mxu0 0.0
    %99 = vmatprep.mubr.f32.mxu0 0.0
    %100 = vmatmul.mubr.f32.gmra.mxu0 %v30
    %v101 = vpop.f32.mrf.mxu0
    %v102 = vadd.f32 0.0, %v101
    %v103 = vpop.f32.mrf.mxu0
    %104 = vmatprep.mubr.f32.mxu0 0.0
    %105 = vmatmul.mubr.f32.gmra.mxu0 %v33
    %v106 = vpop.f32.mrf.mxu0
    %v107 = vadd.f32 0.0, %v106
    %v108 = vpop.f32.mrf.mxu0
    %109 = vdwg.mxu0
    %v110 = vmax.f32 %v102, 0.0
    %v111 = vmax.f32 %v107, 0.0
    %v112 = vmul.f32 %v110, %v110
    %v113 = vmul.f32 %v111, %v111
    %v114 = vld [vmem:[#allocation2] sm:$0xff]
    %v115 = vld [vmem:[#allocation2 + $0x8] sm:$0xff]
    %v116 = vld [vmem:[%s2] sm:$0xff]
    %v117 = vld [vmem:[%s2 + $0x8] sm:$0xff]
    %v118 = vld [vmem:[%s2 + $0x10] sm:$0xff]
    %v119 = vld [vmem:[%s2 + $0x18] sm:$0xff]
    %v120 = vld [vmem:[%s2 + $0x20] sm:$0xff]
    %v121 = vld [vmem:[%s2 + $0x28] sm:$0xff]
    %v122 = vld [vmem:[%s2 + $0x30] sm:$0xff]
    %v123 = vld [vmem:[%s2 + $0x38] sm:$0xff]
    %vm124 = vcmask 523264
    %v126 = vsel %vm124, %v112, 0
    %v129 = vsel %vm124, %v113, 0
    %131 = vmatprep.subr.mxu0 0.0
    %132 = vmatpush1.msra.mxu0 0.0
    %133 = vmatprep.subr.mxu0 0.0
    %134 = vmatpush1.msra.mxu0 0.0
    %135 = vmatprep.subr.mxu0 0.0
    %136 = vmatpush1.msra.mxu0 0.0
    %137 = vmatprep.subr.mxu0 0.0
    %138 = vmatpush1.msra.mxu0 0.0
    %139 = vmatprep.subr.mxu0 0.0
    %140 = vmatpush1.msra.mxu0 0.0
    %141 = vmatprep.subr.mxu0 0.0
    %142 = vmatpush1.msra.mxu0 0.0
    %143 = vmatprep.subr.mxu0 0.0
    %144 = vmatpush1.msra.mxu0 0.0
    %145 = vmatprep.subr.mxu0 0.0
    %146 = vmatpush1.msra.mxu0 0.0
    %147 = vmatprep.subr.mxu0 0.0
    %148 = vmatpush1.msra.mxu0 %v123
    %149 = vmatprep.subr.mxu0 0.0
    %150 = vmatpush1.msra.mxu0 %v122
    %151 = vmatprep.subr.mxu0 0.0
    %152 = vmatpush1.msra.mxu0 %v121
    %153 = vmatprep.subr.mxu0 0.0
    %154 = vmatpush1.msra.mxu0 %v120
    %155 = vmatprep.subr.mxu0 0.0
    %156 = vmatpush1.msra.mxu0 %v119
    %157 = vmatprep.subr.mxu0 0.0
    %158 = vmatpush1.msra.mxu0 %v118
    %159 = vmatprep.subr.mxu0 0.0
    %160 = vmatpush1.msra.mxu0 %v117
    %161 = vmatprep.subr.mxu0 0.0
    %162 = vmatpush1.msra.mxu0 %v116
    %163 = vmatprep.subr.mxu0 0.0
    %164 = vmatpush2.msra.mxu0 0.0
    %165 = vmatprep.subr.mxu0 0.0
    %166 = vmatpush2.msra.mxu0 0.0
    %167 = vmatprep.subr.mxu0 0.0
    %168 = vmatpush2.msra.mxu0 0.0
    %169 = vmatprep.subr.mxu0 0.0
    %170 = vmatpush2.msra.mxu0 0.0
    %171 = vmatprep.subr.mxu0 0.0
    %172 = vmatpush2.msra.mxu0 0.0
    %173 = vmatprep.subr.mxu0 0.0
    %174 = vmatpush2.msra.mxu0 0.0
    %175 = vmatprep.subr.mxu0 0.0
    %176 = vmatpush2.msra.mxu0 0.0
    %177 = vmatprep.subr.mxu0 0.0
    %178 = vmatpush2.msra.mxu0 0.0
    %179 = vmatprep.subr.mxu0 0.0
    %180 = vmatpush2.msra.mxu0 0.0
    %181 = vmatprep.subr.mxu0 0.0
    %182 = vmatpush2.msra.mxu0 0.0
    %183 = vmatprep.subr.mxu0 0.0
    %184 = vmatpush2.msra.mxu0 0.0
    %185 = vmatprep.subr.mxu0 0.0
    %186 = vmatpush2.msra.mxu0 0.0
    %187 = vmatprep.subr.mxu0 0.0
    %188 = vmatpush2.msra.mxu0 0.0
    %189 = vmatprep.subr.mxu0 0.0
    %190 = vmatpush2.msra.mxu0 0.0
    %191 = vmatprep.subr.mxu0 0.0
    %192 = vmatpush2.msra.mxu0 0.0
    %193 = vmatprep.subr.mxu0 0.0
    %194 = vmatpush2.msra.mxu0 0.0
    %195 = vmatprep.mubr.f32.mxu0 0.0
    %196 = vmatmul.mubr.f32.gmra.mxu0 %v126
    %v197 = vpop.f32.mrf.mxu0
    %v198 = vadd.f32 0.0, %v197
    %v199 = vpop.f32.mrf.mxu0
    %200 = vmatprep.mubr.f32.mxu0 0.0
    %201 = vmatmul.mubr.f32.gmra.mxu0 %v129
    %v202 = vpop.f32.mrf.mxu0
    %v203 = vadd.f32 0.0, %v202
    %v204 = vpop.f32.mrf.mxu0
    %205 = vdwg.mxu0
    %v206 = vadd.f32 %v114, %v198
    %v207 = vadd.f32 %v115, %v203
    %208 = vst.msk [vmem:[#allocation2] sm:$0xff] %vm28, %v206
    %209 = vst.msk [vmem:[#allocation2 + $0x8] sm:$0xff] %vm28, %v207
    // Predicated region
    $region18: #{nemotron_mlp.1} parent=1 // pred_check
      %p210 = pneg %p15
    $region19: #{nemotron_mlp.1} parent=1 // pred_check_branch
      %212 = sbr.rel (%p210) target = $region21
    $region20: #{nemotron_mlp.1} parent=1 // pred_region
      %v213 = vld [vmem:[#allocation2] sm:$0xff]
      %v214 = vld [vmem:[#allocation2 + $0x8] sm:$0xff]
      %215 = vst.msk [vmem:[#allocation3] sm:$0xff] %vm28, %v213
      %216 = vst.msk [vmem:[#allocation3 + $0x8] sm:$0xff] %vm28, %v214
    $region21: #{nemotron_mlp.1} parent=1 // pred_fallthru
      _
    // Predicated region
    $region22: #{nemotron_mlp.1} parent=1 // pred_check
      _
    $region23: #{nemotron_mlp.1} parent=1 // pred_check_branch
      %218 = sbr.rel (0) target = $region25
    $region24: #{nemotron_mlp.1} parent=1 // pred_region
      %s220 = ssub.s32 256, 256
      %221 = vsyncadd [#allocation4], %s220
      %s222 = sshll.u32 [#allocation3], 4
      %s223 = int_to_ptr.vmem [resolvable:$true] %s222
      %228 = dma.vmem_to_hbm [thread:$0]  %s223, 256, %s3, [#allocation4], 128, 128, 8
    $region25: #{nemotron_mlp.1} parent=1 // pred_fallthru
      _
    // Predicated region
    $region26: #{nemotron_mlp.1} parent=1 // pred_check
      _
    $region27: #{nemotron_mlp.1} parent=1 // pred_check_branch
      %230 = sbr.rel (0) target = $region29
    $region28: #{nemotron_mlp.1} parent=1 // pred_region
      %231 = dma.done [#allocation4], 256
    $region29: #{nemotron_mlp.1} parent=1 // pred_fallthru
      _
    %232 = vsyncpa [#allocation4], 1

</llo_original>
